<compile_context>
chip_gen: v7x
topology: tpu7x:2x2x1
jax: 0.10.0
libtpu: 0.0.40
codegen_flags: <defaults>
</compile_context>

<pallas_src>
import functools

import jax
import jax.numpy as jnp
from jax.experimental import pallas as pl
from jax.experimental.pallas import tpu as pltpu


# ----------------------------------------------------------------------------
# Fused per-timestep kernel: dropout-apply + LSTM cell + fc1 projection
# ----------------------------------------------------------------------------
def _sigmoid(z):
    return 1.0 / (1.0 + jnp.exp(-z))


def _lstm_fc_kernel(x_ref, m_ref, wih_ref, whh_ref, b_ref, wfc_ref, bfc_ref,
                    o_ref, h_ref, c_ref):
    # x_ref/m_ref: [N, E] (time step t), wih: [E, 4H], whh: [H, 4H], b: [1, 4H]
    # wfc: [H, V], bfc: [1, V], o_ref: [N, V]; h_ref/c_ref: [N, H] VMEM scratch
    t = pl.program_id(0)

    @pl.when(t == 0)
    def _():  # PyTorch LSTM default: zero-initialized (h, c)
        h_ref[...] = jnp.zeros_like(h_ref)
        c_ref[...] = jnp.zeros_like(c_ref)

    hdim = h_ref.shape[-1]
    x = x_ref[...] * m_ref[...]                        # fused dropout (mask==1 at t=0 / eval)
    gates = (jnp.dot(x, wih_ref[...], preferred_element_type=jnp.float32)
             + jnp.dot(h_ref[...], whh_ref[...], preferred_element_type=jnp.float32)
             + b_ref[...])
    # PyTorch gate order: input, forget, cell(g), output
    i_g = _sigmoid(gates[:, 0 * hdim:1 * hdim])
    f_g = _sigmoid(gates[:, 1 * hdim:2 * hdim])
    g_g = jnp.tanh(gates[:, 2 * hdim:3 * hdim])
    o_g = _sigmoid(gates[:, 3 * hdim:4 * hdim])
    c_new = f_g * c_ref[...] + i_g * g_g
    h_new = o_g * jnp.tanh(c_new)
    c_ref[...] = c_new
    h_ref[...] = h_new
    # fc1: hidden -> vocab logits (lane-dense V, multiple of 128)
    o_ref[...] = (jnp.dot(h_new, wfc_ref[...], preferred_element_type=jnp.float32)
                  + bfc_ref[...])


# ----------------------------------------------------------------------------
# Forward pass:  dropout(embed(caption)); cat(features, .); LSTM; fc1
# ----------------------------------------------------------------------------
def decoder_forward(params, features, caption, dropout_key, training=True):
    emb_tbl = params['embed']                  # [V, E]
    n, tcap = caption.shape
    e = emb_tbl.shape[1]
    h = params['w_hh'].shape[0]
    v = params['w_fc'].shape[1]
    steps = tcap + 1

    # --- plain-JAX glue -------------------------------------------------------
    # TODO(synk): per-token row gather + dropout RNG stay outside the kernel
    # (in-kernel pltpu.prng_* does not lower off-TPU; XLA gather is fine here).
    emb = jnp.take(emb_tbl, caption, axis=0)                        # [N, T, E]
    x_seq = jnp.concatenate([features[:, None, :], emb], axis=1)    # [N, T+1, E]
    x_seq = jnp.transpose(x_seq, (1, 0, 2))                         # time-major [T+1, N, E]

    keep = 0.5
    if training:
        mask = jax.random.bernoulli(dropout_key, keep, (tcap, n, e))
        mask = mask.astype(jnp.float32) / keep                      # inverted dropout
        scale_seq = jnp.concatenate(
            [jnp.ones((1, n, e), jnp.float32), mask], axis=0)       # features un-dropped
    else:
        scale_seq = jnp.ones((steps, n, e), jnp.float32)

    # --- single fused pallas_call over the whole sequence ---------------------
    grid_spec = pltpu.PrefetchScalarGridSpec(
        num_scalar_prefetch=0,
        grid=(steps,),
        in_specs=[
            pl.BlockSpec((None, n, e), lambda t: (t, 0, 0)),        # x_t
            pl.BlockSpec((None, n, e), lambda t: (t, 0, 0)),        # dropout scale_t
            pl.BlockSpec((e, 4 * h), lambda t: (0, 0)),             # W_ih (resident)
            pl.BlockSpec((h, 4 * h), lambda t: (0, 0)),             # W_hh (resident)
            pl.BlockSpec((1, 4 * h), lambda t: (0, 0)),             # b_ih + b_hh
            pl.BlockSpec((h, v), lambda t: (0, 0)),                 # W_fc (resident)
            pl.BlockSpec((1, v), lambda t: (0, 0)),                 # b_fc
        ],
        out_specs=pl.BlockSpec((None, n, v), lambda t: (t, 0, 0)),  # logits_t
        scratch_shapes=[pltpu.VMEM((n, h), jnp.float32),            # h state
                        pltpu.VMEM((n, h), jnp.float32)],           # c state
    )
    logits_tm = pl.pallas_call(
        _lstm_fc_kernel,
        out_shape=jax.ShapeDtypeStruct((steps, n, v), jnp.float32),
        grid_spec=grid_spec,
        compiler_params=pltpu.CompilerParams(
            dimension_semantics=("arbitrary",)),                    # sequential recurrence
    )(x_seq, scale_seq, params['w_ih'], params['w_hh'], params['b'],
      params['w_fc'], params['b_fc'])

    return jnp.transpose(logits_tm, (1, 0, 2))                      # [N, T+1, V] batch_first


# ----------------------------------------------------------------------------
# Deterministic synthetic parameters (PyTorch-style init, reduced sizes)
# ----------------------------------------------------------------------------
def init_params(key, vocab_size, embedding_size, hidden_size):
    ks = jax.random.split(key, 7)
    embed = jax.random.normal(ks[0], (vocab_size, embedding_size), jnp.float32)
    lim = 1.0 / float(hidden_size) ** 0.5
    w_ih = jax.random.uniform(ks[1], (embedding_size, 4 * hidden_size),
                              jnp.float32, -lim, lim)
    w_hh = jax.random.uniform(ks[2], (hidden_size, 4 * hidden_size),
                              jnp.float32, -lim, lim)
    b_ih = jax.random.uniform(ks[3], (4 * hidden_size,), jnp.float32, -lim, lim)
    b_hh = jax.random.uniform(ks[4], (4 * hidden_size,), jnp.float32, -lim, lim)
    b = (b_ih + b_hh).reshape(1, 4 * hidden_size)
    w_fc = jax.random.uniform(ks[5], (hidden_size, vocab_size),
                              jnp.float32, -lim, lim)
    b_fc = jax.random.uniform(ks[6], (1, vocab_size), jnp.float32, -lim, lim)
    return dict(embed=embed, w_ih=w_ih, w_hh=w_hh, b=b, w_fc=w_fc, b_fc=b_fc)


if __name__ == "__main__":
    # Small, lane-friendly sizes consistent with the module:
    # vocab=256, embed=128, hidden=128, batch=2, caption length=8.
    vocab, emb_size, hid, batch, seq = 256, 128, 128, 2, 8

    params = init_params(jax.random.PRNGKey(1), vocab, emb_size, hid)
    kf, kc, kd = jax.random.split(jax.random.PRNGKey(0), 3)
    features = jax.random.normal(kf, (batch, emb_size), jnp.float32)   # encoder features
    caption = jax.random.randint(kc, (batch, seq), 0, vocab, jnp.int32)

    fwd = jax.jit(functools.partial(decoder_forward, training=True))
    out = fwd(params, features, caption, kd)
    jax.block_until_ready(out)

    assert out.shape == (batch, seq + 1, vocab) and out.dtype == jnp.float32
    assert bool(jnp.all(jnp.isfinite(out)))
    print("KERNEL_OK")
</pallas_src>

<mosaic_0001>
module attributes {stable_mosaic.version = 11 : i64} {
  func.func @_lstm_fc_kernel(%arg0: i32, %arg1: memref<1x2x128xf32, #tpu.memory_space<vmem>>, %arg2: memref<1x2x128xf32, #tpu.memory_space<vmem>>, %arg3: memref<128x512xf32, #tpu.memory_space<vmem>>, %arg4: memref<128x512xf32, #tpu.memory_space<vmem>>, %arg5: memref<1x512xf32, #tpu.memory_space<vmem>>, %arg6: memref<128x256xf32, #tpu.memory_space<vmem>>, %arg7: memref<1x256xf32, #tpu.memory_space<vmem>>, %arg8: memref<1x2x256xf32, #tpu.memory_space<vmem>>, %arg9: memref<2x128xf32, #tpu.memory_space<vmem>>, %arg10: memref<2x128xf32, #tpu.memory_space<vmem>>) attributes {dimension_semantics = [#tpu.dimension_semantics<arbitrary>], iteration_bounds = array<i64: 9>, scalar_prefetch = 0 : i64, scratch_operands = 2 : i64, tpu.core_type = #tpu.core_type<tc>, window_params = [{transform_indices = @transform_0, window_bounds = array<i64: 1, 2, 128>}, {transform_indices = @transform_1, window_bounds = array<i64: 1, 2, 128>}, {pipeline_mode = #tpu.pipeline_mode<synchronous>, transform_indices = @transform_2, window_bounds = array<i64: 128, 512>}, {pipeline_mode = #tpu.pipeline_mode<synchronous>, transform_indices = @transform_3, window_bounds = array<i64: 128, 512>}, {pipeline_mode = #tpu.pipeline_mode<synchronous>, transform_indices = @transform_4, window_bounds = array<i64: 1, 512>}, {pipeline_mode = #tpu.pipeline_mode<synchronous>, transform_indices = @transform_5, window_bounds = array<i64: 128, 256>}, {pipeline_mode = #tpu.pipeline_mode<synchronous>, transform_indices = @transform_6, window_bounds = array<i64: 1, 256>}, {transform_indices = @transform_7, window_bounds = array<i64: 1, 2, 256>}]} {
    %c0_i32 = arith.constant 0 : i32
    %0 = arith.cmpi eq, %arg0, %c0_i32 : i32
    %1 = arith.extui %0 : i1 to i32
    %c0_i32_0 = arith.constant 0 : i32
    %2 = arith.cmpi ne, %1, %c0_i32_0 : i32
    scf.if %2 {
      %cst_38 = arith.constant 0.000000e+00 : f32
      %59 = vector.broadcast %cst_38 : f32 to vector<2x128xf32>
      %c0_39 = arith.constant 0 : index
      %c0_40 = arith.constant 0 : index
      %60 = vector.load %arg9[%c0_39, %c0_40] : memref<2x128xf32, #tpu.memory_space<vmem>>, vector<2x128xf32>
      tpu.vector_store %arg9[%c0_39, %c0_40], %59 {strides = array<i32>} : memref<2x128xf32, #tpu.memory_space<vmem>>, vector<2x128xf32>,
      %cst_41 = arith.constant 0.000000e+00 : f32
      %61 = vector.broadcast %cst_41 : f32 to vector<2x128xf32>
      %c0_42 = arith.constant 0 : index
      %c0_43 = arith.constant 0 : index
      %62 = vector.load %arg10[%c0_42, %c0_43] : memref<2x128xf32, #tpu.memory_space<vmem>>, vector<2x128xf32>
      tpu.vector_store %arg10[%c0_42, %c0_43], %61 {strides = array<i32>} : memref<2x128xf32, #tpu.memory_space<vmem>>, vector<2x128xf32>,
    } else {
    }
    %c0 = arith.constant 0 : index
    %c0_1 = arith.constant 0 : index
    %c0_2 = arith.constant 0 : index
    %3 = vector.load %arg1[%c0, %c0_1, %c0_2] : memref<1x2x128xf32, #tpu.memory_space<vmem>>, vector<1x2x128xf32>
    %4 = vector.shape_cast %3 : vector<1x2x128xf32> to vector<2x128xf32>
    %c0_3 = arith.constant 0 : index
    %c0_4 = arith.constant 0 : index
    %c0_5 = arith.constant 0 : index
    %5 = vector.load %arg2[%c0_3, %c0_4, %c0_5] : memref<1x2x128xf32, #tpu.memory_space<vmem>>, vector<1x2x128xf32>
    %6 = vector.shape_cast %5 : vector<1x2x128xf32> to vector<2x128xf32>
    %7 = arith.mulf %4, %6 : vector<2x128xf32>
    %c0_6 = arith.constant 0 : index
    %c0_7 = arith.constant 0 : index
    %8 = vector.load %arg3[%c0_6, %c0_7] : memref<128x512xf32, #tpu.memory_space<vmem>>, vector<128x512xf32>
    %cst = arith.constant dense<0.000000e+00> : vector<2x512xf32>
    %9 = tpu.matmul %7, %8, %cst {dimension_numbers = #tpu.dot_dimension_numbers<[1], [0], [0], [1], [0, 0, 1, 1], [], []>} : vector<2x128xf32>, vector<128x512xf32>, vector<2x512xf32> -> vector<2x512xf32>
    %c0_8 = arith.constant 0 : index
    %c0_9 = arith.constant 0 : index
    %10 = vector.load %arg9[%c0_8, %c0_9] : memref<2x128xf32, #tpu.memory_space<vmem>>, vector<2x128xf32>
    %c0_10 = arith.constant 0 : index
    %c0_11 = arith.constant 0 : index
    %11 = vector.load %arg4[%c0_10, %c0_11] : memref<128x512xf32, #tpu.memory_space<vmem>>, vector<128x512xf32>
    %cst_12 = arith.constant dense<0.000000e+00> : vector<2x512xf32>
    %12 = tpu.matmul %10, %11, %cst_12 {dimension_numbers = #tpu.dot_dimension_numbers<[1], [0], [0], [1], [0, 0, 1, 1], [], []>} : vector<2x128xf32>, vector<128x512xf32>, vector<2x512xf32> -> vector<2x512xf32>
    %13 = arith.addf %9, %12 : vector<2x512xf32>
    %c0_13 = arith.constant 0 : index
    %c0_14 = arith.constant 0 : index
    %14 = vector.load %arg5[%c0_13, %c0_14] : memref<1x512xf32, #tpu.memory_space<vmem>>, vector<1x512xf32>
    %15 = vector.broadcast %14 : vector<1x512xf32> to vector<2x512xf32>
    %16 = arith.addf %13, %15 : vector<2x512xf32>
    %17 = vector.extract_strided_slice %16 {offsets = [0, 0], sizes = [2, 128], strides = [1, 1]} : vector<2x512xf32> to vector<2x128xf32>
    %cst_15 = arith.constant 0.000000e+00 : f32
    %18 = vector.broadcast %cst_15 : f32 to vector<2x128xf32>
    %19 = arith.subf %18, %17 : vector<2x128xf32>
    %20 = math.exp %19 : vector<2x128xf32>
    %cst_16 = arith.constant 1.000000e+00 : f32
    %21 = vector.broadcast %cst_16 : f32 to vector<2x128xf32>
    %22 = arith.addf %21, %20 : vector<2x128xf32>
    %cst_17 = arith.constant 1.000000e+00 : f32
    %23 = vector.broadcast %cst_17 : f32 to vector<2x128xf32>
    %24 = arith.divf %23, %22 : vector<2x128xf32>
    %25 = vector.extract_strided_slice %16 {offsets = [0, 128], sizes = [2, 128], strides = [1, 1]} : vector<2x512xf32> to vector<2x128xf32>
    %cst_18 = arith.constant 0.000000e+00 : f32
    %26 = vector.broadcast %cst_18 : f32 to vector<2x128xf32>
    %27 = arith.subf %26, %25 : vector<2x128xf32>
    %28 = math.exp %27 : vector<2x128xf32>
    %cst_19 = arith.constant 1.000000e+00 : f32
    %29 = vector.broadcast %cst_19 : f32 to vector<2x128xf32>
    %30 = arith.addf %29, %28 : vector<2x128xf32>
    %cst_20 = arith.constant 1.000000e+00 : f32
    %31 = vector.broadcast %cst_20 : f32 to vector<2x128xf32>
    %32 = arith.divf %31, %30 : vector<2x128xf32>
    %33 = vector.extract_strided_slice %16 {offsets = [0, 256], sizes = [2, 128], strides = [1, 1]} : vector<2x512xf32> to vector<2x128xf32>
    %34 = math.tanh %33 : vector<2x128xf32>
    %35 = vector.extract_strided_slice %16 {offsets = [0, 384], sizes = [2, 128], strides = [1, 1]} : vector<2x512xf32> to vector<2x128xf32>
    %cst_21 = arith.constant 0.000000e+00 : f32
    %36 = vector.broadcast %cst_21 : f32 to vector<2x128xf32>
    %37 = arith.subf %36, %35 : vector<2x128xf32>
    %38 = math.exp %37 : vector<2x128xf32>
    %cst_22 = arith.constant 1.000000e+00 : f32
    %39 = vector.broadcast %cst_22 : f32 to vector<2x128xf32>
    %40 = arith.addf %39, %38 : vector<2x128xf32>
    %cst_23 = arith.constant 1.000000e+00 : f32
    %41 = vector.broadcast %cst_23 : f32 to vector<2x128xf32>
    %42 = arith.divf %41, %40 : vector<2x128xf32>
    %c0_24 = arith.constant 0 : index
    %c0_25 = arith.constant 0 : index
    %43 = vector.load %arg10[%c0_24, %c0_25] : memref<2x128xf32, #tpu.memory_space<vmem>>, vector<2x128xf32>
    %44 = arith.mulf %32, %43 : vector<2x128xf32>
    %45 = arith.mulf %24, %34 : vector<2x128xf32>
    %46 = arith.addf %44, %45 : vector<2x128xf32>
    %47 = math.tanh %46 : vector<2x128xf32>
    %48 = arith.mulf %42, %47 : vector<2x128xf32>
    %c0_26 = arith.constant 0 : index
    %c0_27 = arith.constant 0 : index
    %49 = vector.load %arg10[%c0_26, %c0_27] : memref<2x128xf32, #tpu.memory_space<vmem>>, vector<2x128xf32>
    tpu.vector_store %arg10[%c0_26, %c0_27], %46 {strides = array<i32>} : memref<2x128xf32, #tpu.memory_space<vmem>>, vector<2x128xf32>,
    %c0_28 = arith.constant 0 : index
    %c0_29 = arith.constant 0 : index
    %50 = vector.load %arg9[%c0_28, %c0_29] : memref<2x128xf32, #tpu.memory_space<vmem>>, vector<2x128xf32>
    tpu.vector_store %arg9[%c0_28, %c0_29], %48 {strides = array<i32>} : memref<2x128xf32, #tpu.memory_space<vmem>>, vector<2x128xf32>,
    %c0_30 = arith.constant 0 : index
    %c0_31 = arith.constant 0 : index
    %51 = vector.load %arg6[%c0_30, %c0_31] : memref<128x256xf32, #tpu.memory_space<vmem>>, vector<128x256xf32>
    %cst_32 = arith.constant dense<0.000000e+00> : vector<2x256xf32>
    %52 = tpu.matmul %48, %51, %cst_32 {dimension_numbers = #tpu.dot_dimension_numbers<[1], [0], [0], [1], [0, 0, 1, 1], [], []>} : vector<2x128xf32>, vector<128x256xf32>, vector<2x256xf32> -> vector<2x256xf32>
    %c0_33 = arith.constant 0 : index
    %c0_34 = arith.constant 0 : index
    %53 = vector.load %arg7[%c0_33, %c0_34] : memref<1x256xf32, #tpu.memory_space<vmem>>, vector<1x256xf32>
    %54 = vector.broadcast %53 : vector<1x256xf32> to vector<2x256xf32>
    %55 = arith.addf %52, %54 : vector<2x256xf32>
    %c0_35 = arith.constant 0 : index
    %c0_36 = arith.constant 0 : index
    %c0_37 = arith.constant 0 : index
    %56 = vector.load %arg8[%c0_35, %c0_36, %c0_37] : memref<1x2x256xf32, #tpu.memory_space<vmem>>, vector<1x2x256xf32>
    %57 = vector.shape_cast %56 : vector<1x2x256xf32> to vector<2x256xf32>
    %58 = vector.shape_cast %55 : vector<2x256xf32> to vector<1x2x256xf32>
    tpu.vector_store %arg8[%c0_35, %c0_36, %c0_37], %58 {strides = array<i32>} : memref<1x2x256xf32, #tpu.memory_space<vmem>>, vector<1x2x256xf32>,
    return
  }
  func.func @transform_0(%arg0: i32) -> (i32, i32, i32) {
    %c0_i32 = arith.constant 0 : i32
    %c0_i32_0 = arith.constant 0 : i32
    %c0_i32_1 = arith.constant 0 : i32
    return %arg0, %c0_i32, %c0_i32_0 : i32, i32, i32
  }
  func.func @transform_1(%arg0: i32) -> (i32, i32, i32) {
    %c0_i32 = arith.constant 0 : i32
    %c0_i32_0 = arith.constant 0 : i32
    %c0_i32_1 = arith.constant 0 : i32
    return %arg0, %c0_i32, %c0_i32_0 : i32, i32, i32
  }
  func.func @transform_2(%arg0: i32) -> (i32, i32) {
    %c0_i32 = arith.constant 0 : i32
    %c0_i32_0 = arith.constant 0 : i32
    %c0_i32_1 = arith.constant 0 : i32
    return %c0_i32, %c0_i32_0 : i32, i32
  }
  func.func @transform_3(%arg0: i32) -> (i32, i32) {
    %c0_i32 = arith.constant 0 : i32
    %c0_i32_0 = arith.constant 0 : i32
    %c0_i32_1 = arith.constant 0 : i32
    return %c0_i32, %c0_i32_0 : i32, i32
  }
  func.func @transform_4(%arg0: i32) -> (i32, i32) {
    %c0_i32 = arith.constant 0 : i32
    %c0_i32_0 = arith.constant 0 : i32
    %c0_i32_1 = arith.constant 0 : i32
    return %c0_i32, %c0_i32_0 : i32, i32
  }
  func.func @transform_5(%arg0: i32) -> (i32, i32) {
    %c0_i32 = arith.constant 0 : i32
    %c0_i32_0 = arith.constant 0 : i32
    %c0_i32_1 = arith.constant 0 : i32
    return %c0_i32, %c0_i32_0 : i32, i32
  }
  func.func @transform_6(%arg0: i32) -> (i32, i32) {
    %c0_i32 = arith.constant 0 : i32
    %c0_i32_0 = arith.constant 0 : i32
    %c0_i32_1 = arith.constant 0 : i32
    return %c0_i32, %c0_i32_0 : i32, i32
  }
  func.func @transform_7(%arg0: i32) -> (i32, i32, i32) {
    %c0_i32 = arith.constant 0 : i32
    %c0_i32_0 = arith.constant 0 : i32
    %c0_i32_1 = arith.constant 0 : i32
    return %arg0, %c0_i32, %c0_i32_0 : i32, i32, i32
  }
}

</mosaic_0001>

<llo_original>
// kernel: decoder_forward.1
$region0: #{decoder_forward.1}
  #allocation0 [shape = 'u32[]', space=smem, size = 0x4, offset = 0x4, fixed_abs, tag = 'smem constant byte address 0x4 - core index']
  #allocation1 [shape = 'u32[144,128]{1,0:T(1,128)}', space=vmem, size = 0x12000, scoped, tag = 'internal scratch']
  #allocation2 [shape = 'f32[2,128]{1,0:T(2,128)}', space=vmem, size = 0x400, scoped, tag = 'scratch operand']
  #allocation3 [shape = 'f32[2,128]{1,0:T(2,128)}', space=vmem, size = 0x400, scoped, tag = 'scratch operand']
  %s0 = inlined_call_operand.vmem [shape: f32[9,2,128], index: 0, kind: input, shape index: {}]
  %s1 = inlined_call_operand.vmem [shape: f32[9,2,128], index: 1, kind: input, shape index: {}]
  %s2 = inlined_call_operand.hbm [shape: f32[128,512], index: 2, kind: input, shape index: {}]
  %s3 = inlined_call_operand.hbm [shape: f32[128,512], index: 3, kind: input, shape index: {}]
  %s4 = inlined_call_operand.vmem [shape: f32[1,512], index: 4, kind: input, shape index: {}]
  %s5 = inlined_call_operand.vmem [shape: f32[128,256], index: 5, kind: input, shape index: {}]
  %s6 = inlined_call_operand.vmem [shape: f32[1,256], index: 6, kind: input, shape index: {}]
  %s7 = inlined_call_operand.hbm [shape: f32[9,2,256], index: 7, kind: output, shape index: {}]
  %s8 = sld [smem:[#allocation0]]
  $region73: #{decoder_forward.1} parent=0
    _
  %s10 = ssub.s32 1, %s8
  %s11 = scalar_select 0, %s10, %s8
  $region1: #{decoder_forward.1} parent=0
    #allocation4 [shape = 'u8[262144]{0}', space=vmem, size = 0x40000, scoped, tag = 'input window, operand 2, single buffered']
    #allocation5 [shape = 's32[2]{0}', space=sflag, size = 0x8, scoped, tag = 'scoped memory for decoder_forward.1']
    #allocation6 [shape = 's32[2]{0}', space=sflag, size = 0x8, scoped, tag = 'scoped memory for decoder_forward.1']
    #allocation7 [shape = 'u8[262144]{0}', space=vmem, size = 0x40000, scoped, tag = 'input window, operand 3, single buffered']
    #allocation8 [shape = 's32[1]{0}', space=sflag, size = 0x4, scoped, tag = 'scoped memory for decoder_forward.1']
    #allocation9 [shape = 'u8[4096]{0}', space=vmem, size = 0x1000, scoped, tag = 'output window, operand 0']
    %12 = vsyncpa [#allocation5], 0
    %13 = vsyncpa [#allocation8], 0
    %14 = vsyncpa [#allocation6], 0
    %s15 = scalar_lea.sflag [#allocation6], 1
    %16 = vsyncpa %s15, 0
    loop: start=0, step=1, limit=11
    $region2: #{decoder_forward.1} parent=1 // loop_pre_header
      _
    $region3: #{decoder_forward.1} parent=1 // loop_header
      %s18 = sphi 0, %s22
      %p19 = scmp.ge.s32.totalorder %s18, 11
      %s28 = sphi 0, %s30
      %s31 = sphi 0, %s28
      %s32 = sphi 0, %s31
      %s48 = sphi 0, %s32
      %s54 = sphi 0, %s56
      %s57 = sphi 0, %s54
      %s58 = sphi 0, %s57
      %s74 = sphi 0, %s58
      %s78 = sphi 0, %s78
      %s80 = sphi 0, %s78
      %s81 = sphi 0, %s80
      %s95 = sphi 0, %s81
      %s99 = sphi 0, %s99
      %s101 = sphi 0, %s99
      %s102 = sphi 0, %s101
      %s116 = sphi 0, %s102
      %s120 = sphi 0, %s120
      %s122 = sphi 0, %s120
      %s123 = sphi 0, %s122
      %s137 = sphi 0, %s123
      %s141 = sphi 0, %s141
      %s143 = sphi 0, %s141
      %s144 = sphi 0, %s143
      %s158 = sphi 0, %s144
      %s162 = sphi 0, %s162
      %s164 = sphi 0, %s162
      %s165 = sphi 0, %s164
      %s179 = sphi 0, %s165
      %s185 = sphi 0, %s187
      %s188 = sphi 0, %s185
      %s189 = sphi 0, %s188
      %s205 = sphi 0, %s189
    $region4: #{decoder_forward.1} parent=1 // loop_header_branch
      %21 = sbr.rel (%p19) target = $region8
    $region5: #{decoder_forward.1} parent=1 // loop_body
      %s23 = ssub.s32 %s18, 1
      %s24 = ssub.s32 %s18, 2
      %s25 = sadd.s32 %s18, 1
      %s26 = ssub.s32 %s18, %s25
      %p27 = scmp.eq.s32.totalorder %s26, 0
      %s29 = sadd.s32 %s28, 1
      %s30 = scalar_select %p27, %s28, %s29
      %p33 = pneg %p27
      %p34 = scmp.eq.s32.totalorder %s18, 8
      %p35 = por %p33, %p34
      %p36 = scmp.ne.s32.totalorder %s28, %s31
      %p37 = scmp.eq.s32.totalorder %s18, 0
      %p38 = por %p36, %p37
      %p39 = scmp.ne.s32.totalorder %s28, %s31
      %p40 = scmp.eq.s32.totalorder %s23, 8
      %p41 = por %p39, %p40
      %p42 = scmp.ne.s32.totalorder %s31, %s32
      %p43 = scmp.eq.s32.totalorder %s23, 0
      %p44 = por %p42, %p43
      %p45 = scmp.ne.s32.totalorder %s31, %s32
      %p46 = scmp.eq.s32.totalorder %s24, 8
      %p47 = por %p45, %p46
      %p49 = scmp.ne.s32.totalorder %s32, %s48
      %p50 = scmp.eq.s32.totalorder %s24, 0
      %p51 = por %p49, %p50
      %s52 = ssub.s32 %s18, %s25
      %p53 = scmp.eq.s32.totalorder %s52, 0
      %s55 = sadd.s32 %s54, 1
      %s56 = scalar_select %p53, %s54, %s55
      %p59 = pneg %p53
      %p60 = scmp.eq.s32.totalorder %s18, 8
      %p61 = por %p59, %p60
      %p62 = scmp.ne.s32.totalorder %s54, %s57
      %p63 = scmp.eq.s32.totalorder %s18, 0
      %p64 = por %p62, %p63
      %p65 = scmp.ne.s32.totalorder %s54, %s57
      %p66 = scmp.eq.s32.totalorder %s23, 8
      %p67 = por %p65, %p66
      %p68 = scmp.ne.s32.totalorder %s57, %s58
      %p69 = scmp.eq.s32.totalorder %s23, 0
      %p70 = por %p68, %p69
      %p71 = scmp.ne.s32.totalorder %s57, %s58
      %p72 = scmp.eq.s32.totalorder %s24, 8
      %p73 = por %p71, %p72
      %p75 = scmp.ne.s32.totalorder %s58, %s74
      %p76 = scmp.eq.s32.totalorder %s24, 0
      %p77 = por %p75, %p76
      %s79 = sadd.s32 %s78, 1
      %p82 = scmp.eq.s32.totalorder %s18, 8
      %p83 = scmp.ne.s32.totalorder %s78, %s80
      %p84 = scmp.eq.s32.totalorder %s18, 0
      %p85 = por %p83, %p84
      %p86 = scmp.ne.s32.totalorder %s78, %s80
      %p87 = scmp.eq.s32.totalorder %s23, 8
      %p88 = por %p86, %p87
      %p89 = scmp.ne.s32.totalorder %s80, %s81
      %p90 = scmp.eq.s32.totalorder %s23, 0
      %p91 = por %p89, %p90
      %p92 = scmp.ne.s32.totalorder %s80, %s81
      %p93 = scmp.eq.s32.totalorder %s24, 8
      %p94 = por %p92, %p93
      %p96 = scmp.ne.s32.totalorder %s81, %s95
      %p97 = scmp.eq.s32.totalorder %s24, 0
      %p98 = por %p96, %p97
      %s100 = sadd.s32 %s99, 1
      %p103 = scmp.eq.s32.totalorder %s18, 8
      %p104 = scmp.ne.s32.totalorder %s99, %s101
      %p105 = scmp.eq.s32.totalorder %s18, 0
      %p106 = por %p104, %p105
      %p107 = scmp.ne.s32.totalorder %s99, %s101
      %p108 = scmp.eq.s32.totalorder %s23, 8
      %p109 = por %p107, %p108
      %p110 = scmp.ne.s32.totalorder %s101, %s102
      %p111 = scmp.eq.s32.totalorder %s23, 0
      %p112 = por %p110, %p111
      %p113 = scmp.ne.s32.totalorder %s101, %s102
      %p114 = scmp.eq.s32.totalorder %s24, 8
      %p115 = por %p113, %p114
      %p117 = scmp.ne.s32.totalorder %s102, %s116
      %p118 = scmp.eq.s32.totalorder %s24, 0
      %p119 = por %p117, %p118
      %s121 = sadd.s32 %s120, 1
      %p124 = scmp.eq.s32.totalorder %s18, 8
      %p125 = scmp.ne.s32.totalorder %s120, %s122
      %p126 = scmp.eq.s32.totalorder %s18, 0
      %p127 = por %p125, %p126
      %p128 = scmp.ne.s32.totalorder %s120, %s122
      %p129 = scmp.eq.s32.totalorder %s23, 8
      %p130 = por %p128, %p129
      %p131 = scmp.ne.s32.totalorder %s122, %s123
      %p132 = scmp.eq.s32.totalorder %s23, 0
      %p133 = por %p131, %p132
      %p134 = scmp.ne.s32.totalorder %s122, %s123
      %p135 = scmp.eq.s32.totalorder %s24, 8
      %p136 = por %p134, %p135
      %p138 = scmp.ne.s32.totalorder %s123, %s137
      %p139 = scmp.eq.s32.totalorder %s24, 0
      %p140 = por %p138, %p139
      %s142 = sadd.s32 %s141, 1
      %p145 = scmp.eq.s32.totalorder %s18, 8
      %p146 = scmp.ne.s32.totalorder %s141, %s143
      %p147 = scmp.eq.s32.totalorder %s18, 0
      %p148 = por %p146, %p147
      %p149 = scmp.ne.s32.totalorder %s141, %s143
      %p150 = scmp.eq.s32.totalorder %s23, 8
      %p151 = por %p149, %p150
      %p152 = scmp.ne.s32.totalorder %s143, %s144
      %p153 = scmp.eq.s32.totalorder %s23, 0
      %p154 = por %p152, %p153
      %p155 = scmp.ne.s32.totalorder %s143, %s144
      %p156 = scmp.eq.s32.totalorder %s24, 8
      %p157 = por %p155, %p156
      %p159 = scmp.ne.s32.totalorder %s144, %s158
      %p160 = scmp.eq.s32.totalorder %s24, 0
      %p161 = por %p159, %p160
      %s163 = sadd.s32 %s162, 1
      %p166 = scmp.eq.s32.totalorder %s18, 8
      %p167 = scmp.ne.s32.totalorder %s162, %s164
      %p168 = scmp.eq.s32.totalorder %s18, 0
      %p169 = por %p167, %p168
      %p170 = scmp.ne.s32.totalorder %s162, %s164
      %p171 = scmp.eq.s32.totalorder %s23, 8
      %p172 = por %p170, %p171
      %p173 = scmp.ne.s32.totalorder %s164, %s165
      %p174 = scmp.eq.s32.totalorder %s23, 0
      %p175 = por %p173, %p174
      %p176 = scmp.ne.s32.totalorder %s164, %s165
      %p177 = scmp.eq.s32.totalorder %s24, 8
      %p178 = por %p176, %p177
      %p180 = scmp.ne.s32.totalorder %s165, %s179
      %p181 = scmp.eq.s32.totalorder %s24, 0
      %p182 = por %p180, %p181
      %s183 = ssub.s32 %s18, %s25
      %p184 = scmp.eq.s32.totalorder %s183, 0
      %s186 = sadd.s32 %s185, 1
      %s187 = scalar_select %p184, %s185, %s186
      %p190 = pneg %p184
      %p191 = scmp.eq.s32.totalorder %s18, 8
      %p192 = por %p190, %p191
      %p193 = scmp.ne.s32.totalorder %s185, %s188
      %p194 = scmp.eq.s32.totalorder %s18, 0
      %p195 = por %p193, %p194
      %p196 = scmp.ne.s32.totalorder %s185, %s188
      %p197 = scmp.eq.s32.totalorder %s23, 8
      %p198 = por %p196, %p197
      %p199 = scmp.ne.s32.totalorder %s188, %s189
      %p200 = scmp.eq.s32.totalorder %s23, 0
      %p201 = por %p199, %p200
      %p202 = scmp.ne.s32.totalorder %s188, %s189
      %p203 = scmp.eq.s32.totalorder %s24, 8
      %p204 = por %p202, %p203
      %p206 = scmp.ne.s32.totalorder %s189, %s205
      %p207 = scmp.eq.s32.totalorder %s24, 0
      %p208 = por %p206, %p207
      %p209 = scmp.le.s32.totalorder 1, %s18
      %p210 = scmp.lt.s32.totalorder %s18, 10
      %p211 = pnand %p209, %p210
      %p212 = pneg %p211
      // Predicated region
      $region9: #{decoder_forward.1} parent=5 // pred_check
        _
      $region10: #{decoder_forward.1} parent=5 // pred_check_branch
        %214 = sbr.rel (%p211) target = $region12
      $region11: #{decoder_forward.1} parent=5 // pred_region
        %s215 = ssub.s32 %s18, 1
        // Predicated region
        $region13: #{decoder_forward.1} parent=11 // pred_check
          %p216 = pneg %p91
        $region14: #{decoder_forward.1} parent=11 // pred_check_branch
          %218 = sbr.rel (%p216) target = $region16
        $region15: #{decoder_forward.1} parent=11 // pred_region
          %s220 = ssub.s32 8192, 8192
          %221 = vsyncadd [#allocation5], %s220
          %s222 = sshll.u32 [#allocation4], 4
          %s223 = int_to_ptr.vmem [resolvable:$true] %s222
          %228 = dma.hbm_to_vmem [thread:$0]  %s2, 8192, %s223, [#allocation5], 512, 512, 32
        $region16: #{decoder_forward.1} parent=11 // pred_fallthru
          _
        // Predicated region
        $region17: #{decoder_forward.1} parent=11 // pred_check
          %p229 = pneg %p112
        $region18: #{decoder_forward.1} parent=11 // pred_check_branch
          %231 = sbr.rel (%p229) target = $region20
        $region19: #{decoder_forward.1} parent=11 // pred_region
          %s233 = ssub.s32 8192, 8192
          %234 = vsyncadd [#allocation8], %s233
          %s235 = sshll.u32 [#allocation7], 4
          %s236 = int_to_ptr.vmem [resolvable:$true] %s235
          %241 = dma.hbm_to_vmem [thread:$0]  %s3, 8192, %s236, [#allocation8], 512, 512, 32
        $region20: #{decoder_forward.1} parent=11 // pred_fallthru
          _
        // Predicated region
        $region21: #{decoder_forward.1} parent=11 // pred_check
          %p242 = pneg %p133
        $region22: #{decoder_forward.1} parent=11 // pred_check_branch
          %244 = sbr.rel (%p242) target = $region24
        $region23: #{decoder_forward.1} parent=11 // pred_region
          _
        $region24: #{decoder_forward.1} parent=11 // pred_fallthru
          _
        // Predicated region
        $region25: #{decoder_forward.1} parent=11 // pred_check
          %p245 = pneg %p154
        $region26: #{decoder_forward.1} parent=11 // pred_check_branch
          %247 = sbr.rel (%p245) target = $region28
        $region27: #{decoder_forward.1} parent=11 // pred_region
          _
        $region28: #{decoder_forward.1} parent=11 // pred_fallthru
          _
        // Predicated region
        $region29: #{decoder_forward.1} parent=11 // pred_check
          %p248 = pneg %p175
        $region30: #{decoder_forward.1} parent=11 // pred_check_branch
          %250 = sbr.rel (%p248) target = $region32
        $region31: #{decoder_forward.1} parent=11 // pred_region
          _
        $region32: #{decoder_forward.1} parent=11 // pred_fallthru
          _
      $region12: #{decoder_forward.1} parent=5 // pred_fallthru
        _
      %p251 = scmp.lt.s32.totalorder %s18, 9
      // Predicated region
      $region33: #{decoder_forward.1} parent=5 // pred_check
        %p252 = pneg %p251
      $region34: #{decoder_forward.1} parent=5 // pred_check_branch
        %254 = sbr.rel (%p252) target = $region36
      $region35: #{decoder_forward.1} parent=5 // pred_region
        // Predicated region
        $region37: #{decoder_forward.1} parent=35 // pred_check
          %p255 = pneg %p38
        $region38: #{decoder_forward.1} parent=35 // pred_check_branch
          %257 = sbr.rel (%p255) target = $region40
        $region39: #{decoder_forward.1} parent=35 // pred_region
          %p258 = scmp.lt.s32.totalorder %s18, 8
          %s259 = scalar_select %p258, %s18, 8
          %s260 = smul.addr %s259, 2
          %s261 = scalar_lea.vmem %s0, %s260
        $region40: #{decoder_forward.1} parent=35 // pred_fallthru
          _
        // Predicated region
        $region41: #{decoder_forward.1} parent=35 // pred_check
          %p262 = pneg %p64
        $region42: #{decoder_forward.1} parent=35 // pred_check_branch
          %264 = sbr.rel (%p262) target = $region44
        $region43: #{decoder_forward.1} parent=35 // pred_region
          %p265 = scmp.lt.s32.totalorder %s18, 8
          %s266 = scalar_select %p265, %s18, 8
          %s267 = smul.addr %s266, 2
          %s268 = scalar_lea.vmem %s1, %s267
        $region44: #{decoder_forward.1} parent=35 // pred_fallthru
          _
      $region36: #{decoder_forward.1} parent=5 // pred_fallthru
        _
      %p269 = scmp.le.s32.totalorder 1, %s18
      %p270 = scmp.lt.s32.totalorder %s18, 10
      %p271 = pnand %p269, %p270
      %p272 = pneg %p271
      // Predicated region
      $region45: #{decoder_forward.1} parent=5 // pred_check
        _
      $region46: #{decoder_forward.1} parent=5 // pred_check_branch
        %274 = sbr.rel (%p271) target = $region48
      $region47: #{decoder_forward.1} parent=5 // pred_region
        %s275 = ssub.s32 %s18, 1
        // Predicated region
        $region49: #{decoder_forward.1} parent=47 // pred_check
          %p276 = pneg %p91
        $region50: #{decoder_forward.1} parent=47 // pred_check_branch
          %278 = sbr.rel (%p276) target = $region52
        $region51: #{decoder_forward.1} parent=47 // pred_region
          %279 = dma.done [#allocation5], 8192
        $region52: #{decoder_forward.1} parent=47 // pred_fallthru
          _
        // Predicated region
        $region53: #{decoder_forward.1} parent=47 // pred_check
          %p280 = pneg %p112
        $region54: #{decoder_forward.1} parent=47 // pred_check_branch
          %282 = sbr.rel (%p280) target = $region56
        $region55: #{decoder_forward.1} parent=47 // pred_region
          %283 = dma.done [#allocation8], 8192
        $region56: #{decoder_forward.1} parent=47 // pred_fallthru
          _
        %p284 = scmp.lt.s32.totalorder %s23, 8
        %s285 = scalar_select %p284, %s23, 8
        %s286 = smul.addr %s285, 2
        %s287 = scalar_lea.vmem %s0, %s286
        %p288 = pneg %p44
        %p289 = pneg %p41
        %p290 = scmp.lt.s32.totalorder %s23, 8
        %s291 = scalar_select %p290, %s23, 8
        %s292 = smul.addr %s291, 2
        %s293 = scalar_lea.vmem %s1, %s292
        %p294 = pneg %p70
        %p295 = pneg %p67
        %p296 = pneg %p91
        %p297 = pneg %p88
        %p298 = pneg %p112
        %p299 = pneg %p109
        %p300 = pneg %p133
        %p301 = pneg %p130
        %p302 = pneg %p154
        %p303 = pneg %p151
        %p304 = pneg %p175
        %p305 = pneg %p172
        %p306 = pneg %p201
        %p307 = pneg %p198
        %s308 = sand.u32 %s188, 1
        %s309 = scalar_lea.sflag [#allocation6], %s308
        %s310 = sand.u32 %s188, 1
        %s311 = smul.addr %s310, 4
        %s312 = scalar_lea.vmem [#allocation9], %s311
        %p313 = scmp.lt.s32.totalorder %s23, 8
        %s314 = scalar_select %p313, %s23, 8
        %s315 = smul.addr %s314, 2
        %s316 = scalar_lea.vmem %s0, %s315
        %p317 = scmp.lt.s32.totalorder %s23, 8
        %s318 = scalar_select %p317, %s23, 8
        %s319 = smul.addr %s318, 2
        %s320 = scalar_lea.vmem %s1, %s319
        %p321 = scmp.eq.s32.totalorder %s23, 0
        // Predicated region
        $region57: #{decoder_forward.1} parent=47 // pred_check
          %p322 = pneg %p321
        $region58: #{decoder_forward.1} parent=47 // pred_check_branch
          %324 = sbr.rel (%p322) target = $region60
        $region59: #{decoder_forward.1} parent=47 // pred_region
          %325 = vst [vmem:[#allocation2] sm:$0x3] 0.0
          %326 = vst [vmem:[#allocation3] sm:$0x3] 0.0
        $region60: #{decoder_forward.1} parent=47 // pred_fallthru
          _
        %v327 = vld [vmem:[%s316] sm:$0x3]
        %v328 = vld [vmem:[%s320] sm:$0x3]
        %v329 = vmul.f32 %v327, %v328
        %v330 = vld [vmem:[#allocation4] sm:$0xff]
        %v331 = vld [vmem:[#allocation4 + $0x8] sm:$0xff]
        %v332 = vld [vmem:[#allocation4 + $0x10] sm:$0xff]
        %v333 = vld [vmem:[#allocation4 + $0x18] sm:$0xff]
        %v334 = vld [vmem:[#allocation4 + $0x20] sm:$0xff]
        %v335 = vld [vmem:[#allocation4 + $0x28] sm:$0xff]
        %v336 = vld [vmem:[#allocation4 + $0x30] sm:$0xff]
        %v337 = vld [vmem:[#allocation4 + $0x38] sm:$0xff]
        %v338 = vld [vmem:[#allocation4 + $0x40] sm:$0xff]
        %v339 = vld [vmem:[#allocation4 + $0x48] sm:$0xff]
        %v340 = vld [vmem:[#allocation4 + $0x50] sm:$0xff]
        %v341 = vld [vmem:[#allocation4 + $0x58] sm:$0xff]
        %v342 = vld [vmem:[#allocation4 + $0x60] sm:$0xff]
        %v343 = vld [vmem:[#allocation4 + $0x68] sm:$0xff]
        %v344 = vld [vmem:[#allocation4 + $0x70] sm:$0xff]
        %v345 = vld [vmem:[#allocation4 + $0x78] sm:$0xff]
        %v346 = vld [vmem:[#allocation4 + $0x80] sm:$0xff]
        %v347 = vld [vmem:[#allocation4 + $0x88] sm:$0xff]
        %v348 = vld [vmem:[#allocation4 + $0x90] sm:$0xff]
        %v349 = vld [vmem:[#allocation4 + $0x98] sm:$0xff]
        %v350 = vld [vmem:[#allocation4 + $0xa0] sm:$0xff]
        %v351 = vld [vmem:[#allocation4 + $0xa8] sm:$0xff]
        %v352 = vld [vmem:[#allocation4 + $0xb0] sm:$0xff]
        %v353 = vld [vmem:[#allocation4 + $0xb8] sm:$0xff]
        %v354 = vld [vmem:[#allocation4 + $0xc0] sm:$0xff]
        %v355 = vld [vmem:[#allocation4 + $0xc8] sm:$0xff]
        %v356 = vld [vmem:[#allocation4 + $0xd0] sm:$0xff]
        %v357 = vld [vmem:[#allocation4 + $0xd8] sm:$0xff]
        %v358 = vld [vmem:[#allocation4 + $0xe0] sm:$0xff]
        %v359 = vld [vmem:[#allocation4 + $0xe8] sm:$0xff]
        %v360 = vld [vmem:[#allocation4 + $0xf0] sm:$0xff]
        %v361 = vld [vmem:[#allocation4 + $0xf8] sm:$0xff]
        %v362 = vld [vmem:[#allocation4 + $0x100] sm:$0xff]
        %v363 = vld [vmem:[#allocation4 + $0x108] sm:$0xff]
        %v364 = vld [vmem:[#allocation4 + $0x110] sm:$0xff]
        %v365 = vld [vmem:[#allocation4 + $0x118] sm:$0xff]
        %v366 = vld [vmem:[#allocation4 + $0x120] sm:$0xff]
        %v367 = vld [vmem:[#allocation4 + $0x128] sm:$0xff]
        %v368 = vld [vmem:[#allocation4 + $0x130] sm:$0xff]
        %v369 = vld [vmem:[#allocation4 + $0x138] sm:$0xff]
        %v370 = vld [vmem:[#allocation4 + $0x140] sm:$0xff]
        %v371 = vld [vmem:[#allocation4 + $0x148] sm:$0xff]
        %v372 = vld [vmem:[#allocation4 + $0x150] sm:$0xff]
        %v373 = vld [vmem:[#allocation4 + $0x158] sm:$0xff]
        %v374 = vld [vmem:[#allocation4 + $0x160] sm:$0xff]
        %v375 = vld [vmem:[#allocation4 + $0x168] sm:$0xff]
        %v376 = vld [vmem:[#allocation4 + $0x170] sm:$0xff]
        %v377 = vld [vmem:[#allocation4 + $0x178] sm:$0xff]
        %v378 = vld [vmem:[#allocation4 + $0x180] sm:$0xff]
        %v379 = vld [vmem:[#allocation4 + $0x188] sm:$0xff]
        %v380 = vld [vmem:[#allocation4 + $0x190] sm:$0xff]
        %v381 = vld [vmem:[#allocation4 + $0x198] sm:$0xff]
        %v382 = vld [vmem:[#allocation4 + $0x1a0] sm:$0xff]
        %v383 = vld [vmem:[#allocation4 + $0x1a8] sm:$0xff]
        %v384 = vld [vmem:[#allocation4 + $0x1b0] sm:$0xff]
        %v385 = vld [vmem:[#allocation4 + $0x1b8] sm:$0xff]
        %v386 = vld [vmem:[#allocation4 + $0x1c0] sm:$0xff]
        %v387 = vld [vmem:[#allocation4 + $0x1c8] sm:$0xff]
        %v388 = vld [vmem:[#allocation4 + $0x1d0] sm:$0xff]
        %v389 = vld [vmem:[#allocation4 + $0x1d8] sm:$0xff]
        %v390 = vld [vmem:[#allocation4 + $0x1e0] sm:$0xff]
        %v391 = vld [vmem:[#allocation4 + $0x1e8] sm:$0xff]
        %v392 = vld [vmem:[#allocation4 + $0x1f0] sm:$0xff]
        %v393 = vld [vmem:[#allocation4 + $0x1f8] sm:$0xff]
        %v394 = vld [vmem:[#allocation2] sm:$0x3]
        %v395 = vld [vmem:[#allocation7] sm:$0xff]
        %v396 = vld [vmem:[#allocation7 + $0x8] sm:$0xff]
        %v397 = vld [vmem:[#allocation7 + $0x10] sm:$0xff]
        %v398 = vld [vmem:[#allocation7 + $0x18] sm:$0xff]
        %v399 = vld [vmem:[#allocation7 + $0x20] sm:$0xff]
        %v400 = vld [vmem:[#allocation7 + $0x28] sm:$0xff]
        %v401 = vld [vmem:[#allocation7 + $0x30] sm:$0xff]
        %v402 = vld [vmem:[#allocation7 + $0x38] sm:$0xff]
        %v403 = vld [vmem:[#allocation7 + $0x40] sm:$0xff]
        %v404 = vld [vmem:[#allocation7 + $0x48] sm:$0xff]
        %v405 = vld [vmem:[#allocation7 + $0x50] sm:$0xff]
        %v406 = vld [vmem:[#allocation7 + $0x58] sm:$0xff]
        %v407 = vld [vmem:[#allocation7 + $0x60] sm:$0xff]
        %v408 = vld [vmem:[#allocation7 + $0x68] sm:$0xff]
        %v409 = vld [vmem:[#allocation7 + $0x70] sm:$0xff]
        %v410 = vld [vmem:[#allocation7 + $0x78] sm:$0xff]
        %v411 = vld [vmem:[#allocation7 + $0x80] sm:$0xff]
        %v412 = vld [vmem:[#allocation7 + $0x88] sm:$0xff]
        %v413 = vld [vmem:[#allocation7 + $0x90] sm:$0xff]
        %v414 = vld [vmem:[#allocation7 + $0x98] sm:$0xff]
        %v415 = vld [vmem:[#allocation7 + $0xa0] sm:$0xff]
        %v416 = vld [vmem:[#allocation7 + $0xa8] sm:$0xff]
        %v417 = vld [vmem:[#allocation7 + $0xb0] sm:$0xff]
        %v418 = vld [vmem:[#allocation7 + $0xb8] sm:$0xff]
        %v419 = vld [vmem:[#allocation7 + $0xc0] sm:$0xff]
        %v420 = vld [vmem:[#allocation7 + $0xc8] sm:$0xff]
        %v421 = vld [vmem:[#allocation7 + $0xd0] sm:$0xff]
        %v422 = vld [vmem:[#allocation7 + $0xd8] sm:$0xff]
        %v423 = vld [vmem:[#allocation7 + $0xe0] sm:$0xff]
        %v424 = vld [vmem:[#allocation7 + $0xe8] sm:$0xff]
        %v425 = vld [vmem:[#allocation7 + $0xf0] sm:$0xff]
        %v426 = vld [vmem:[#allocation7 + $0xf8] sm:$0xff]
        %v427 = vld [vmem:[#allocation7 + $0x100] sm:$0xff]
        %v428 = vld [vmem:[#allocation7 + $0x108] sm:$0xff]
        %v429 = vld [vmem:[#allocation7 + $0x110] sm:$0xff]
        %v430 = vld [vmem:[#allocation7 + $0x118] sm:$0xff]
        %v431 = vld [vmem:[#allocation7 + $0x120] sm:$0xff]
        %v432 = vld [vmem:[#allocation7 + $0x128] sm:$0xff]
        %v433 = vld [vmem:[#allocation7 + $0x130] sm:$0xff]
        %v434 = vld [vmem:[#allocation7 + $0x138] sm:$0xff]
        %v435 = vld [vmem:[#allocation7 + $0x140] sm:$0xff]
        %v436 = vld [vmem:[#allocation7 + $0x148] sm:$0xff]
        %v437 = vld [vmem:[#allocation7 + $0x150] sm:$0xff]
        %v438 = vld [vmem:[#allocation7 + $0x158] sm:$0xff]
        %v439 = vld [vmem:[#allocation7 + $0x160] sm:$0xff]
        %v440 = vld [vmem:[#allocation7 + $0x168] sm:$0xff]
        %v441 = vld [vmem:[#allocation7 + $0x170] sm:$0xff]
        %v442 = vld [vmem:[#allocation7 + $0x178] sm:$0xff]
        %v443 = vld [vmem:[#allocation7 + $0x180] sm:$0xff]
        %v444 = vld [vmem:[#allocation7 + $0x188] sm:$0xff]
        %v445 = vld [vmem:[#allocation7 + $0x190] sm:$0xff]
        %v446 = vld [vmem:[#allocation7 + $0x198] sm:$0xff]
        %v447 = vld [vmem:[#allocation7 + $0x1a0] sm:$0xff]
        %v448 = vld [vmem:[#allocation7 + $0x1a8] sm:$0xff]
        %v449 = vld [vmem:[#allocation7 + $0x1b0] sm:$0xff]
        %v450 = vld [vmem:[#allocation7 + $0x1b8] sm:$0xff]
        %v451 = vld [vmem:[#allocation7 + $0x1c0] sm:$0xff]
        %v452 = vld [vmem:[#allocation7 + $0x1c8] sm:$0xff]
        %v453 = vld [vmem:[#allocation7 + $0x1d0] sm:$0xff]
        %v454 = vld [vmem:[#allocation7 + $0x1d8] sm:$0xff]
        %v455 = vld [vmem:[#allocation7 + $0x1e0] sm:$0xff]
        %v456 = vld [vmem:[#allocation7 + $0x1e8] sm:$0xff]
        %v457 = vld [vmem:[#allocation7 + $0x1f0] sm:$0xff]
        %v458 = vld [vmem:[#allocation7 + $0x1f8] sm:$0xff]
        %459 = vmatprep.subr.mxu0 %v396
        %460 = vmatpush1.msra.mxu0 %v395
        %461 = vmatprep.subr.mxu0 %v400
        %462 = vmatpush1.msra.mxu0 %v399
        %463 = vmatprep.subr.mxu0 %v404
        %464 = vmatpush1.msra.mxu0 %v403
        %465 = vmatprep.subr.mxu0 %v408
        %466 = vmatpush1.msra.mxu0 %v407
        %467 = vmatprep.subr.mxu0 %v412
        %468 = vmatpush1.msra.mxu0 %v411
        %469 = vmatprep.subr.mxu0 %v416
        %470 = vmatpush1.msra.mxu0 %v415
        %471 = vmatprep.subr.mxu0 %v420
        %472 = vmatpush1.msra.mxu0 %v419
        %473 = vmatprep.subr.mxu0 %v424
        %474 = vmatpush1.msra.mxu0 %v423
        %475 = vmatprep.subr.mxu0 %v428
        %476 = vmatpush1.msra.mxu0 %v427
        %477 = vmatprep.subr.mxu0 %v432
        %478 = vmatpush1.msra.mxu0 %v431
        %479 = vmatprep.subr.mxu0 %v436
        %480 = vmatpush1.msra.mxu0 %v435
        %481 = vmatprep.subr.mxu0 %v440
        %482 = vmatpush1.msra.mxu0 %v439
        %483 = vmatprep.subr.mxu0 %v444
        %484 = vmatpush1.msra.mxu0 %v443
        %485 = vmatprep.subr.mxu0 %v448
        %486 = vmatpush1.msra.mxu0 %v447
        %487 = vmatprep.subr.mxu0 %v452
        %488 = vmatpush1.msra.mxu0 %v451
        %489 = vmatprep.subr.mxu0 %v456
        %490 = vmatpush1.msra.mxu0 %v455
        %491 = vmatprep.subr.mxu0 0.0
        %492 = vmatpush1.msra.mxu0 0.0
        %493 = vmatprep.subr.mxu0 0.0
        %494 = vmatpush1.msra.mxu0 0.0
        %495 = vmatprep.subr.mxu0 0.0
        %496 = vmatpush1.msra.mxu0 0.0
        %497 = vmatprep.subr.mxu0 0.0
        %498 = vmatpush1.msra.mxu0 0.0
        %499 = vmatprep.subr.mxu0 0.0
        %500 = vmatpush1.msra.mxu0 0.0
        %501 = vmatprep.subr.mxu0 0.0
        %502 = vmatpush1.msra.mxu0 0.0
        %503 = vmatprep.subr.mxu0 0.0
        %504 = vmatpush1.msra.mxu0 0.0
        %505 = vmatprep.subr.mxu0 0.0
        %506 = vmatpush1.msra.mxu0 0.0
        %507 = vmatprep.subr.mxu0 0.0
        %508 = vmatpush1.msra.mxu0 0.0
        %509 = vmatprep.subr.mxu0 0.0
        %510 = vmatpush1.msra.mxu0 0.0
        %511 = vmatprep.subr.mxu0 0.0
        %512 = vmatpush1.msra.mxu0 0.0
        %513 = vmatprep.subr.mxu0 0.0
        %514 = vmatpush1.msra.mxu0 0.0
        %515 = vmatprep.subr.mxu0 0.0
        %516 = vmatpush1.msra.mxu0 0.0
        %517 = vmatprep.subr.mxu0 0.0
        %518 = vmatpush1.msra.mxu0 0.0
        %519 = vmatprep.subr.mxu0 0.0
        %520 = vmatpush1.msra.mxu0 0.0
        %521 = vmatprep.subr.mxu0 0.0
        %522 = vmatpush1.msra.mxu0 0.0
        %523 = vmatprep.mubr.f32.mxu0 0.0
        %524 = vmatmul.mubr.f32.gmra.mrb[0].mxu0 %v394
        %v525 = vpop.f32.mrb[0].mxu0
        %v526 = vadd.f32 0.0, %v525
        %v527 = vpop.f32.mrb[0].mxu0
        %v528 = vadd.f32 0.0, %v527
        %529 = vdwg.mxu0
        %530 = vmatprep.subr.mxu0 %v398
        %531 = vmatpush1.msra.mxu0 %v397
        %532 = vmatprep.subr.mxu0 %v402
        %533 = vmatpush1.msra.mxu0 %v401
        %534 = vmatprep.subr.mxu0 %v406
        %535 = vmatpush1.msra.mxu0 %v405
        %536 = vmatprep.subr.mxu0 %v410
        %537 = vmatpush1.msra.mxu0 %v409
        %538 = vmatprep.subr.mxu0 %v414
        %539 = vmatpush1.msra.mxu0 %v413
        %540 = vmatprep.subr.mxu0 %v418
        %541 = vmatpush1.msra.mxu0 %v417
        %542 = vmatprep.subr.mxu0 %v422
        %543 = vmatpush1.msra.mxu0 %v421
        %544 = vmatprep.subr.mxu0 %v426
        %545 = vmatpush1.msra.mxu0 %v425
        %546 = vmatprep.subr.mxu0 %v430
        %547 = vmatpush1.msra.mxu0 %v429
        %548 = vmatprep.subr.mxu0 %v434
        %549 = vmatpush1.msra.mxu0 %v433
        %550 = vmatprep.subr.mxu0 %v438
        %551 = vmatpush1.msra.mxu0 %v437
        %552 = vmatprep.subr.mxu0 %v442
        %553 = vmatpush1.msra.mxu0 %v441
        %554 = vmatprep.subr.mxu0 %v446
        %555 = vmatpush1.msra.mxu0 %v445
        %556 = vmatprep.subr.mxu0 %v450
        %557 = vmatpush1.msra.mxu0 %v449
        %558 = vmatprep.subr.mxu0 %v454
        %559 = vmatpush1.msra.mxu0 %v453
        %560 = vmatprep.subr.mxu0 %v458
        %561 = vmatpush1.msra.mxu0 %v457
        %562 = vmatprep.subr.mxu0 0.0
        %563 = vmatpush1.msra.mxu0 0.0
        %564 = vmatprep.subr.mxu0 0.0
        %565 = vmatpush1.msra.mxu0 0.0
        %566 = vmatprep.subr.mxu0 0.0
        %567 = vmatpush1.msra.mxu0 0.0
        %568 = vmatprep.subr.mxu0 0.0
        %569 = vmatpush1.msra.mxu0 0.0
        %570 = vmatprep.subr.mxu0 0.0
        %571 = vmatpush1.msra.mxu0 0.0
        %572 = vmatprep.subr.mxu0 0.0
        %573 = vmatpush1.msra.mxu0 0.0
        %574 = vmatprep.subr.mxu0 0.0
        %575 = vmatpush1.msra.mxu0 0.0
        %576 = vmatprep.subr.mxu0 0.0
        %577 = vmatpush1.msra.mxu0 0.0
        %578 = vmatprep.subr.mxu0 0.0
        %579 = vmatpush1.msra.mxu0 0.0
        %580 = vmatprep.subr.mxu0 0.0
        %581 = vmatpush1.msra.mxu0 0.0
        %582 = vmatprep.subr.mxu0 0.0
        %583 = vmatpush1.msra.mxu0 0.0
        %584 = vmatprep.subr.mxu0 0.0
        %585 = vmatpush1.msra.mxu0 0.0
        %586 = vmatprep.subr.mxu0 0.0
        %587 = vmatpush1.msra.mxu0 0.0
        %588 = vmatprep.subr.mxu0 0.0
        %589 = vmatpush1.msra.mxu0 0.0
        %590 = vmatprep.subr.mxu0 0.0
        %591 = vmatpush1.msra.mxu0 0.0
        %592 = vmatprep.subr.mxu0 0.0
        %593 = vmatpush1.msra.mxu0 0.0
        %594 = vmatprep.mubr.f32.mxu0 0.0
        %595 = vmatmul.mubr.f32.gmra.mrb[0].mxu0 %v394
        %v596 = vpop.f32.mrb[0].mxu0
        %v597 = vadd.f32 0.0, %v596
        %v598 = vpop.f32.mrb[0].mxu0
        %v599 = vadd.f32 0.0, %v598
        %600 = vdwg.mxu0
        %601 = vmatprep.subr.mxu0 %v331
        %602 = vmatpush1.msra.mxu0 %v330
        %603 = vmatprep.subr.mxu0 %v335
        %604 = vmatpush1.msra.mxu0 %v334
        %605 = vmatprep.subr.mxu0 %v339
        %606 = vmatpush1.msra.mxu0 %v338
        %607 = vmatprep.subr.mxu0 %v343
        %608 = vmatpush1.msra.mxu0 %v342
        %609 = vmatprep.subr.mxu0 %v347
        %610 = vmatpush1.msra.mxu0 %v346
        %611 = vmatprep.subr.mxu0 %v351
        %612 = vmatpush1.msra.mxu0 %v350
        %613 = vmatprep.subr.mxu0 %v355
        %614 = vmatpush1.msra.mxu0 %v354
        %615 = vmatprep.subr.mxu0 %v359
        %616 = vmatpush1.msra.mxu0 %v358
        %617 = vmatprep.subr.mxu0 %v363
        %618 = vmatpush1.msra.mxu0 %v362
        %619 = vmatprep.subr.mxu0 %v367
        %620 = vmatpush1.msra.mxu0 %v366
        %621 = vmatprep.subr.mxu0 %v371
        %622 = vmatpush1.msra.mxu0 %v370
        %623 = vmatprep.subr.mxu0 %v375
        %624 = vmatpush1.msra.mxu0 %v374
        %625 = vmatprep.subr.mxu0 %v379
        %626 = vmatpush1.msra.mxu0 %v378
        %627 = vmatprep.subr.mxu0 %v383
        %628 = vmatpush1.msra.mxu0 %v382
        %629 = vmatprep.subr.mxu0 %v387
        %630 = vmatpush1.msra.mxu0 %v386
        %631 = vmatprep.subr.mxu0 %v391
        %632 = vmatpush1.msra.mxu0 %v390
        %633 = vmatprep.subr.mxu0 0.0
        %634 = vmatpush1.msra.mxu0 0.0
        %635 = vmatprep.subr.mxu0 0.0
        %636 = vmatpush1.msra.mxu0 0.0
        %637 = vmatprep.subr.mxu0 0.0
        %638 = vmatpush1.msra.mxu0 0.0
        %639 = vmatprep.subr.mxu0 0.0
        %640 = vmatpush1.msra.mxu0 0.0
        %641 = vmatprep.subr.mxu0 0.0
        %642 = vmatpush1.msra.mxu0 0.0
        %643 = vmatprep.subr.mxu0 0.0
        %644 = vmatpush1.msra.mxu0 0.0
        %645 = vmatprep.subr.mxu0 0.0
        %646 = vmatpush1.msra.mxu0 0.0
        %647 = vmatprep.subr.mxu0 0.0
        %648 = vmatpush1.msra.mxu0 0.0
        %649 = vmatprep.subr.mxu0 0.0
        %650 = vmatpush1.msra.mxu0 0.0
        %651 = vmatprep.subr.mxu0 0.0
        %652 = vmatpush1.msra.mxu0 0.0
        %653 = vmatprep.subr.mxu0 0.0
        %654 = vmatpush1.msra.mxu0 0.0
        %655 = vmatprep.subr.mxu0 0.0
        %656 = vmatpush1.msra.mxu0 0.0
        %657 = vmatprep.subr.mxu0 0.0
        %658 = vmatpush1.msra.mxu0 0.0
        %659 = vmatprep.subr.mxu0 0.0
        %660 = vmatpush1.msra.mxu0 0.0
        %661 = vmatprep.subr.mxu0 0.0
        %662 = vmatpush1.msra.mxu0 0.0
        %663 = vmatprep.subr.mxu0 0.0
        %664 = vmatpush1.msra.mxu0 0.0
        %665 = vmatprep.mubr.f32.mxu0 0.0
        %666 = vmatmul.mubr.f32.gmra.mrb[0].mxu0 %v329
        %v667 = vpop.f32.mrb[0].mxu0
        %v668 = vadd.f32 %v526, %v667
        %v669 = vpop.f32.mrb[0].mxu0
        %v670 = vadd.f32 %v528, %v669
        %671 = vdwg.mxu0
        %672 = vmatprep.subr.mxu0 %v333
        %673 = vmatpush1.msra.mxu0 %v332
        %674 = vmatprep.subr.mxu0 %v337
        %675 = vmatpush1.msra.mxu0 %v336
        %676 = vmatprep.subr.mxu0 %v341
        %677 = vmatpush1.msra.mxu0 %v340
        %678 = vmatprep.subr.mxu0 %v345
        %679 = vmatpush1.msra.mxu0 %v344
        %680 = vmatprep.subr.mxu0 %v349
        %681 = vmatpush1.msra.mxu0 %v348
        %682 = vmatprep.subr.mxu0 %v353
        %683 = vmatpush1.msra.mxu0 %v352
        %684 = vmatprep.subr.mxu0 %v357
        %685 = vmatpush1.msra.mxu0 %v356
        %686 = vmatprep.subr.mxu0 %v361
        %687 = vmatpush1.msra.mxu0 %v360
        %688 = vmatprep.subr.mxu0 %v365
        %689 = vmatpush1.msra.mxu0 %v364
        %690 = vmatprep.subr.mxu0 %v369
        %691 = vmatpush1.msra.mxu0 %v368
        %692 = vmatprep.subr.mxu0 %v373
        %693 = vmatpush1.msra.mxu0 %v372
        %694 = vmatprep.subr.mxu0 %v377
        %695 = vmatpush1.msra.mxu0 %v376
        %696 = vmatprep.subr.mxu0 %v381
        %697 = vmatpush1.msra.mxu0 %v380
        %698 = vmatprep.subr.mxu0 %v385
        %699 = vmatpush1.msra.mxu0 %v384
        %700 = vmatprep.subr.mxu0 %v389
        %701 = vmatpush1.msra.mxu0 %v388
        %702 = vmatprep.subr.mxu0 %v393
        %703 = vmatpush1.msra.mxu0 %v392
        %704 = vmatprep.subr.mxu0 0.0
        %705 = vmatpush1.msra.mxu0 0.0
        %706 = vmatprep.subr.mxu0 0.0
        %707 = vmatpush1.msra.mxu0 0.0
        %708 = vmatprep.subr.mxu0 0.0
        %709 = vmatpush1.msra.mxu0 0.0
        %710 = vmatprep.subr.mxu0 0.0
        %711 = vmatpush1.msra.mxu0 0.0
        %712 = vmatprep.subr.mxu0 0.0
        %713 = vmatpush1.msra.mxu0 0.0
        %714 = vmatprep.subr.mxu0 0.0
        %715 = vmatpush1.msra.mxu0 0.0
        %716 = vmatprep.subr.mxu0 0.0
        %717 = vmatpush1.msra.mxu0 0.0
        %718 = vmatprep.subr.mxu0 0.0
        %719 = vmatpush1.msra.mxu0 0.0
        %720 = vmatprep.subr.mxu0 0.0
        %721 = vmatpush1.msra.mxu0 0.0
        %722 = vmatprep.subr.mxu0 0.0
        %723 = vmatpush1.msra.mxu0 0.0
        %724 = vmatprep.subr.mxu0 0.0
        %725 = vmatpush1.msra.mxu0 0.0
        %726 = vmatprep.subr.mxu0 0.0
        %727 = vmatpush1.msra.mxu0 0.0
        %728 = vmatprep.subr.mxu0 0.0
        %729 = vmatpush1.msra.mxu0 0.0
        %730 = vmatprep.subr.mxu0 0.0
        %731 = vmatpush1.msra.mxu0 0.0
        %732 = vmatprep.subr.mxu0 0.0
        %733 = vmatpush1.msra.mxu0 0.0
        %734 = vmatprep.subr.mxu0 0.0
        %735 = vmatpush1.msra.mxu0 0.0
        %736 = vmatprep.mubr.f32.mxu0 0.0
        %737 = vmatmul.mubr.f32.gmra.mrb[0].mxu0 %v329
        %v738 = vpop.f32.mrb[0].mxu0
        %v739 = vadd.f32 %v597, %v738
        %v740 = vpop.f32.mrb[0].mxu0
        %v741 = vadd.f32 %v599, %v740
        %742 = vdwg.mxu0
        %v743 = vld [vmem:[%s4] sm:$0xf]
        %v745 = vlaneseq
        %v746 = vshrl.u32 %v745, 7
        %v747 = vsub.s32 0, %v746
        %v748 = vrot.slane %v743, %v747
        %v749 = vlaneseq
        %v750 = vshrl.u32 %v749, 7
        %v751 = vsub.s32 1, %v750
        %v752 = vrot.slane %v743, %v751
        %v753 = vlaneseq
        %v754 = vshrl.u32 %v753, 7
        %v755 = vsub.s32 2, %v754
        %v756 = vrot.slane %v743, %v755
        %v757 = vlaneseq
        %v758 = vshrl.u32 %v757, 7
        %v759 = vsub.s32 3, %v758
        %v760 = vrot.slane %v743, %v759
        %v765 = vadd.f32 %v668, %v748
        %v766 = vadd.f32 %v670, %v752
        %v767 = vadd.f32 %v739, %v756
        %v768 = vadd.f32 %v741, %v760
        %v769 = vsub.f32 0.0, %v765
        %v770 = vmul.f32 %v769, 1.442695
        %v771 = vpow.pop %v770
        %v772 = vadd.f32 %v771, 1.0
        %v773 = vrcp.pop %v772
        %v774 = vmul.f32 1.0, %v773
        %v775 = vsub.f32 0.0, %v766
        %v776 = vmul.f32 %v775, 1.442695
        %v777 = vpow.pop %v776
        %v778 = vadd.f32 %v777, 1.0
        %v779 = vrcp.pop %v778
        %v780 = vmul.f32 1.0, %v779
        %v781 = vtanh.pop %v767
        %v782 = vsub.f32 0.0, %v768
        %v783 = vmul.f32 %v782, 1.442695
        %v784 = vpow.pop %v783
        %v785 = vadd.f32 %v784, 1.0
        %v786 = vrcp.pop %v785
        %v787 = vmul.f32 1.0, %v786
        %v788 = vld [vmem:[#allocation3] sm:$0x3]
        %v789 = vmul.f32 %v780, %v788
        %v790 = vmul.f32 %v774, %v781
        %v791 = vadd.f32 %v789, %v790
        %v792 = vtanh.pop %v791
        %v793 = vmul.f32 %v787, %v792
        %794 = vst [vmem:[#allocation3] sm:$0x3] %v791
        %795 = vst [vmem:[#allocation2] sm:$0x3] %v793
        %v796 = vld [vmem:[%s5] sm:$0xff]
        %v797 = vld [vmem:[%s5 + $0x8] sm:$0xff]
        %v798 = vld [vmem:[%s5 + $0x10] sm:$0xff]
        %v799 = vld [vmem:[%s5 + $0x18] sm:$0xff]
        %v800 = vld [vmem:[%s5 + $0x20] sm:$0xff]
        %v801 = vld [vmem:[%s5 + $0x28] sm:$0xff]
        %v802 = vld [vmem:[%s5 + $0x30] sm:$0xff]
        %v803 = vld [vmem:[%s5 + $0x38] sm:$0xff]
        %v804 = vld [vmem:[%s5 + $0x40] sm:$0xff]
        %v805 = vld [vmem:[%s5 + $0x48] sm:$0xff]
        %v806 = vld [vmem:[%s5 + $0x50] sm:$0xff]
        %v807 = vld [vmem:[%s5 + $0x58] sm:$0xff]
        %v808 = vld [vmem:[%s5 + $0x60] sm:$0xff]
        %v809 = vld [vmem:[%s5 + $0x68] sm:$0xff]
        %v810 = vld [vmem:[%s5 + $0x70] sm:$0xff]
        %v811 = vld [vmem:[%s5 + $0x78] sm:$0xff]
        %v812 = vld [vmem:[%s5 + $0x80] sm:$0xff]
        %v813 = vld [vmem:[%s5 + $0x88] sm:$0xff]
        %v814 = vld [vmem:[%s5 + $0x90] sm:$0xff]
        %v815 = vld [vmem:[%s5 + $0x98] sm:$0xff]
        %v816 = vld [vmem:[%s5 + $0xa0] sm:$0xff]
        %v817 = vld [vmem:[%s5 + $0xa8] sm:$0xff]
        %v818 = vld [vmem:[%s5 + $0xb0] sm:$0xff]
        %v819 = vld [vmem:[%s5 + $0xb8] sm:$0xff]
        %v820 = vld [vmem:[%s5 + $0xc0] sm:$0xff]
        %v821 = vld [vmem:[%s5 + $0xc8] sm:$0xff]
        %v822 = vld [vmem:[%s5 + $0xd0] sm:$0xff]
        %v823 = vld [vmem:[%s5 + $0xd8] sm:$0xff]
        %v824 = vld [vmem:[%s5 + $0xe0] sm:$0xff]
        %v825 = vld [vmem:[%s5 + $0xe8] sm:$0xff]
        %v826 = vld [vmem:[%s5 + $0xf0] sm:$0xff]
        %v827 = vld [vmem:[%s5 + $0xf8] sm:$0xff]
        %v828 = vld [vmem:[%s6] sm:$0x3]
        %v830 = vlaneseq
        %v831 = vshrl.u32 %v830, 7
        %v832 = vsub.s32 0, %v831
        %v833 = vrot.slane %v828, %v832
        %v834 = vlaneseq
        %v835 = vshrl.u32 %v834, 7
        %v836 = vsub.s32 1, %v835
        %v837 = vrot.slane %v828, %v836
        %840 = vmatprep.subr.mxu0 %v797
        %841 = vmatpush1.msra.mxu0 %v796
        %842 = vmatprep.subr.mxu0 %v799
        %843 = vmatpush1.msra.mxu0 %v798
        %844 = vmatprep.subr.mxu0 %v801
        %845 = vmatpush1.msra.mxu0 %v800
        %846 = vmatprep.subr.mxu0 %v803
        %847 = vmatpush1.msra.mxu0 %v802
        %848 = vmatprep.subr.mxu0 %v805
        %849 = vmatpush1.msra.mxu0 %v804
        %850 = vmatprep.subr.mxu0 %v807
        %851 = vmatpush1.msra.mxu0 %v806
        %852 = vmatprep.subr.mxu0 %v809
        %853 = vmatpush1.msra.mxu0 %v808
        %854 = vmatprep.subr.mxu0 %v811
        %855 = vmatpush1.msra.mxu0 %v810
        %856 = vmatprep.subr.mxu0 %v813
        %857 = vmatpush1.msra.mxu0 %v812
        %858 = vmatprep.subr.mxu0 %v815
        %859 = vmatpush1.msra.mxu0 %v814
        %860 = vmatprep.subr.mxu0 %v817
        %861 = vmatpush1.msra.mxu0 %v816
        %862 = vmatprep.subr.mxu0 %v819
        %863 = vmatpush1.msra.mxu0 %v818
        %864 = vmatprep.subr.mxu0 %v821
        %865 = vmatpush1.msra.mxu0 %v820
        %866 = vmatprep.subr.mxu0 %v823
        %867 = vmatpush1.msra.mxu0 %v822
        %868 = vmatprep.subr.mxu0 %v825
        %869 = vmatpush1.msra.mxu0 %v824
        %870 = vmatprep.subr.mxu0 %v827
        %871 = vmatpush1.msra.mxu0 %v826
        %872 = vmatprep.subr.mxu0 0.0
        %873 = vmatpush1.msra.mxu0 0.0
        %874 = vmatprep.subr.mxu0 0.0
        %875 = vmatpush1.msra.mxu0 0.0
        %876 = vmatprep.subr.mxu0 0.0
        %877 = vmatpush1.msra.mxu0 0.0
        %878 = vmatprep.subr.mxu0 0.0
        %879 = vmatpush1.msra.mxu0 0.0
        %880 = vmatprep.subr.mxu0 0.0
        %881 = vmatpush1.msra.mxu0 0.0
        %882 = vmatprep.subr.mxu0 0.0
        %883 = vmatpush1.msra.mxu0 0.0
        %884 = vmatprep.subr.mxu0 0.0
        %885 = vmatpush1.msra.mxu0 0.0
        %886 = vmatprep.subr.mxu0 0.0
        %887 = vmatpush1.msra.mxu0 0.0
        %888 = vmatprep.subr.mxu0 0.0
        %889 = vmatpush1.msra.mxu0 0.0
        %890 = vmatprep.subr.mxu0 0.0
        %891 = vmatpush1.msra.mxu0 0.0
        %892 = vmatprep.subr.mxu0 0.0
        %893 = vmatpush1.msra.mxu0 0.0
        %894 = vmatprep.subr.mxu0 0.0
        %895 = vmatpush1.msra.mxu0 0.0
        %896 = vmatprep.subr.mxu0 0.0
        %897 = vmatpush1.msra.mxu0 0.0
        %898 = vmatprep.subr.mxu0 0.0
        %899 = vmatpush1.msra.mxu0 0.0
        %900 = vmatprep.subr.mxu0 0.0
        %901 = vmatpush1.msra.mxu0 0.0
        %902 = vmatprep.subr.mxu0 0.0
        %903 = vmatpush1.msra.mxu0 0.0
        %904 = vmatprep.mubr.f32.mxu0 0.0
        %905 = vmatmul.mubr.f32.gmra.mrb[0].mxu0 %v793
        %v906 = vpop.f32.mrb[0].mxu0
        %v907 = vadd.f32 %v833, %v906
        %v908 = vpop.f32.mrb[0].mxu0
        %v909 = vadd.f32 %v837, %v908
        %910 = vdwg.mxu0
        %v913 = vcombine.low %v907, %v909
        %v915 = vunpack.c.l.s4 1983009808
        %v916 = vunpack.c.0.s8 %v915
        %v917 = vlaneseq
        %v918 = vshrl.u32 %v917, 7
        %v919 = vsub.s32 %v916, %v918
        %v920 = vrot.slane %v913, %v919
        %922 = vst [vmem:[%s312] sm:$0xf] %v920
        %s923 = sand.u32 %s188, 1
        %s924 = scalar_lea.sflag [#allocation6], %s923
        %s925 = sand.u32 %s188, 1
        %s926 = smul.addr %s925, 4
        %s927 = scalar_lea.vmem [#allocation9], %s926
        // Predicated region
        $region61: #{decoder_forward.1} parent=47 // pred_check
          %p928 = pneg %p198
        $region62: #{decoder_forward.1} parent=47 // pred_check_branch
          %930 = sbr.rel (%p928) target = $region64
        $region63: #{decoder_forward.1} parent=47 // pred_region
          %s932 = ssub.s32 64, 64
          %933 = vsyncadd %s924, %s932
          %s934 = smul.addr %s23, 2
          %s935 = smul.addr %s934, 32
          %s936 = scalar_lea.hbm %s7, %s935
          %s938 = sshll.u32 %s927, 4
          %s939 = int_to_ptr.vmem [resolvable:$true] %s938
          %941 = dma.vmem_to_hbm [thread:$0]  %s939, 64, %s936, %s924
        $region64: #{decoder_forward.1} parent=47 // pred_fallthru
          _
      $region48: #{decoder_forward.1} parent=5 // pred_fallthru
        _
      %p942 = scmp.le.s32.totalorder 2, %s18
      // Predicated region
      $region65: #{decoder_forward.1} parent=5 // pred_check
        %p943 = pneg %p942
      $region66: #{decoder_forward.1} parent=5 // pred_check_branch
        %945 = sbr.rel (%p943) target = $region68
      $region67: #{decoder_forward.1} parent=5 // pred_region
        %s946 = ssub.s32 %s18, 2
        // Predicated region
        $region69: #{decoder_forward.1} parent=67 // pred_check
          %p947 = pneg %p204
        $region70: #{decoder_forward.1} parent=67 // pred_check_branch
          %949 = sbr.rel (%p947) target = $region72
        $region71: #{decoder_forward.1} parent=67 // pred_region
          %s950 = sand.u32 %s189, 1
          %s951 = scalar_lea.sflag [#allocation6], %s950
          %s952 = sand.u32 %s189, 1
          %s953 = smul.addr %s952, 4
          %s954 = scalar_lea.vmem [#allocation9], %s953
          %955 = dma.done %s951, 64
        $region72: #{decoder_forward.1} parent=67 // pred_fallthru
          _
      $region68: #{decoder_forward.1} parent=5 // pred_fallthru
        _
    $region6: #{decoder_forward.1} parent=1 // loop_footer
      %s22 = sadd.s32 1, %s18
    $region7: #{decoder_forward.1} parent=1 // loop_footer_branch
      %17 = sbr.rel target = $region3
    $region8: #{decoder_forward.1} parent=1 // loop_exit
      _
    %956 = vsyncpa [#allocation5], 1
    %s957 = scalar_lea.sflag [#allocation5], 1
    %958 = vsyncpa %s957, 1
    %959 = vsyncpa [#allocation8], 1
    %960 = vsyncpa [#allocation6], 1
    %s961 = scalar_lea.sflag [#allocation6], 1
    %962 = vsyncpa %s961, 1

</llo_original>
